<compile_context>
chip_gen: v7x
topology: tpu7x:2x2x1
jax: 0.10.0
libtpu: 0.0.40
codegen_flags: <defaults>
</compile_context>

<pallas_src>
import functools

import jax
import jax.numpy as jnp
from jax.experimental import pallas as pl
from jax.experimental.pallas import tpu as pltpu


# ----------------------------- helpers -----------------------------

def _round_up(x: int, m: int) -> int:
    return ((x + m - 1) // m) * m


def _vmem_capacity_bytes() -> int:
    try:
        return int(pltpu.get_tpu_info().vmem_capacity_bytes)
    except Exception:
        return 64 * 1024 * 1024  # conservative (v7x per-TensorCore)


def _sublane(dtype) -> int:
    # native sublane multiple: 8 for 4-byte, 16 for 2-byte, 32 for 1-byte
    return 8 * max(1, 4 // jnp.dtype(dtype).itemsize)


def _pad_to(x, target_shape):
    pads = [(0, t - s) for s, t in zip(x.shape, target_shape)]
    if any(hi for _, hi in pads):
        x = jnp.pad(x, pads)
    return x


def _footprint_bytes(tm, tn, tk, in_sz, out_sz) -> int:
    # double-buffered operand + output tiles, plus the resident f32 accumulator
    return (2 * (tm * tk + tk * tn) * in_sz
            + 2 * tm * tn * out_sz
            + tm * tn * 4)


def _vmem_limit(footprint_bytes, cap) -> int:
    return int(min(max(16 << 20, footprint_bytes + (8 << 20)), int(cap * 0.75)))


def _dim_candidates(dim, align, max_tile):
    dim_a = _round_up(dim, align)
    cap = min(dim_a, max_tile)
    cands = {c for c in (128, 256, 384, 512, 1024, 2048, 4096)
             if align <= c <= cap and c % align == 0}
    if dim_a <= max_tile:
        cands.add(dim_a)           # single full-dim block (zero padding)
    if not cands:
        cands.add(_round_up(min(dim_a, max_tile), align))
    return sorted(cands)


def _plan_tiles(M, N, K, in_dtype, out_dtype, budget_bytes, *,
                prefer_two_m_blocks):
    in_sz = jnp.dtype(in_dtype).itemsize
    out_sz = jnp.dtype(out_dtype).itemsize
    sub = _sublane(in_dtype)
    max_k = 2048 if in_sz >= 4 else 4096

    tm_c = _dim_candidates(M, sub, 512)
    tn_c = _dim_candidates(N, 128, 512)
    tk_c = _dim_candidates(K, 128, max_k)

    best = None
    for tm in tm_c:
        Mp = _round_up(M, tm)
        for tn in tn_c:
            Np = _round_up(N, tn)
            for tk in tk_c:
                Kp = _round_up(K, tk)
                fp = _footprint_bytes(tm, tn, tk, in_sz, out_sz)
                if fp > budget_bytes:
                    continue
                padded_flops = Mp * Np * Kp
                hbm = (Mp * Kp * (Np // tn) + Kp * Np * (Mp // tm)) * in_sz
                key = (padded_flops, hbm, -(tm * tk + tk * tn))
                if best is None or key < best[0]:
                    best = (key, (tm, tn, tk))
    if best is None:  # minimal candidates always fit in practice
        tm, tn, tk = min(tm_c), min(tn_c), min(tk_c)
    else:
        tm, tn, tk = best[1]

    Mp, Np, Kp = _round_up(M, tm), _round_up(N, tn), _round_up(K, tk)

    # Dims covered by a single block use the full (unpadded) dim -> no padding
    # copy in the wrapper and no wasted MXU work (allowed by the
    # "(sublane,128)-aligned OR equal-to-full-dim" block rule).
    if Mp // tm == 1:
        tm, Mp = M, M
    if Np // tn == 1:
        tn, Np = N, N
    if Kp // tk == 1:
        tk, Kp = K, K

    # v7x megacore: give the two TensorCores something to shard when the
    # parallel (M, N) grid would otherwise be a single step.
    if (prefer_two_m_blocks and (Mp // tm) * (Np // tn) == 1
            and Mp >= 2 * sub and Mp % (2 * sub) == 0):
        tm = Mp // 2

    fp = _footprint_bytes(tm, tn, tk, in_sz, out_sz)
    return tm, tn, tk, Mp, Np, Kp, fp


# ----------------------------- kernels -----------------------------

def _mm_tiled_kernel(a_ref, b_ref, o_ref, acc_ref, *, k_axis):
    # Shared by the 2D grid (M, N, K) and the batched grid (B, M, N, K) with a
    # squeezed leading batch dim; `k_axis` is the (innermost) reduction axis.
    @pl.when(pl.program_id(k_axis) == 0)
    def _init():
        acc_ref[...] = jnp.zeros_like(acc_ref)

    acc_ref[...] += jnp.dot(a_ref[...], b_ref[...],
                            preferred_element_type=jnp.float32)

    @pl.when(pl.program_id(k_axis) == pl.num_programs(k_axis) - 1)
    def _done():
        o_ref[...] = acc_ref[...].astype(o_ref.dtype)


def _bmm_packed_kernel(a_ref, b_ref, o_ref):
    # Several whole per-batch matmuls per grid step (small-shape path).
    o_ref[...] = jax.lax.dot_general(
        a_ref[...], b_ref[...],
        dimension_numbers=(((2,), (1,)), ((0,), (0,))),
        preferred_element_type=jnp.float32,
    ).astype(o_ref.dtype)


# ----------------------------- wrappers -----------------------------

def _matmul_2d(a, b, out_dtype):
    M, K = a.shape
    _, N = b.shape
    in_dtype = jnp.result_type(a.dtype, b.dtype)
    a = a.astype(in_dtype)
    b = b.astype(in_dtype)

    cap = _vmem_capacity_bytes()
    budget = max(16 << 20, min(cap // 2, 48 << 20))
    tm, tn, tk, Mp, Np, Kp, fp = _plan_tiles(
        M, N, K, in_dtype, out_dtype, budget, prefer_two_m_blocks=True)

    a_p = _pad_to(a, (Mp, Kp))
    b_p = _pad_to(b, (Kp, Np))

    cost = pl.CostEstimate(
        flops=2 * M * N * K,
        transcendentals=0,
        bytes_accessed=(a.size * a.dtype.itemsize + b.size * b.dtype.itemsize
                        + M * N * jnp.dtype(out_dtype).itemsize),
    )

    out_p = pl.pallas_call(
        functools.partial(_mm_tiled_kernel, k_axis=2),
        out_shape=jax.ShapeDtypeStruct((Mp, Np), out_dtype),
        grid_spec=pltpu.PrefetchScalarGridSpec(
            num_scalar_prefetch=0,
            grid=(Mp // tm, Np // tn, Kp // tk),
            in_specs=[
                pl.BlockSpec((tm, tk), lambda i, j, k: (i, k)),
                pl.BlockSpec((tk, tn), lambda i, j, k: (k, j)),
            ],
            out_specs=pl.BlockSpec((tm, tn), lambda i, j, k: (i, j)),
            scratch_shapes=[pltpu.VMEM((tm, tn), jnp.float32)],
        ),
        compiler_params=pltpu.CompilerParams(
            dimension_semantics=("parallel", "parallel", "arbitrary"),
            vmem_limit_bytes=_vmem_limit(fp, cap),
        ),
        cost_estimate=cost,
    )(a_p, b_p)
    if Mp == M and Np == N:
        return out_p
    return out_p[:M, :N]


def _matmul_batched(a, b, out_dtype):
    B, M, K = a.shape
    _, _, N = b.shape
    in_dtype = jnp.result_type(a.dtype, b.dtype)
    a = a.astype(in_dtype)
    b = b.astype(in_dtype)
    in_sz = jnp.dtype(in_dtype).itemsize
    out_sz = jnp.dtype(out_dtype).itemsize

    cap = _vmem_capacity_bytes()
    budget = max(16 << 20, min(cap // 2, 48 << 20))

    cost = pl.CostEstimate(
        flops=2 * B * M * N * K,
        transcendentals=0,
        bytes_accessed=(a.size * in_sz + b.size * in_sz + B * M * N * out_sz),
    )

    per_batch_bytes = (M * K + K * N) * in_sz + M * N * out_sz
    small = (M <= 256 and N <= 256 and K <= 2048
             and per_batch_bytes <= (2 << 20))

    if small:
        # Memory-bound path: pack batches into ~3 MiB blocks, never pad
        # M/K/N (blocks use the full dims), keep >=2 parallel grid steps.
        tb = max(1, min(B, (3 << 20) // max(per_batch_bytes, 1)))
        tb = min(tb, max(1, budget // (4 * max(per_batch_bytes, 1))))
        if B >= 2:
            tb = min(tb, pl.cdiv(B, 2))      # 2 TensorCores on v7x
        Bp = _round_up(B, tb)
        a_p = _pad_to(a, (Bp, M, K))
        b_p = _pad_to(b, (Bp, K, N))
        fp_small = 2 * tb * per_batch_bytes

        out_p = pl.pallas_call(
            _bmm_packed_kernel,
            out_shape=jax.ShapeDtypeStruct((Bp, M, N), out_dtype),
            grid_spec=pltpu.PrefetchScalarGridSpec(
                num_scalar_prefetch=0,
                grid=(Bp // tb,),
                in_specs=[
                    pl.BlockSpec((tb, M, K), lambda bi: (bi, 0, 0)),
                    pl.BlockSpec((tb, K, N), lambda bi: (bi, 0, 0)),
                ],
                out_specs=pl.BlockSpec((tb, M, N), lambda bi: (bi, 0, 0)),
            ),
            compiler_params=pltpu.CompilerParams(
                dimension_semantics=("parallel",),
                vmem_limit_bytes=_vmem_limit(fp_small, cap),
            ),
            cost_estimate=cost,
        )(a_p, b_p)
        return out_p if Bp == B else out_p[:B]

    # General path: per-batch tiled matmul with an f32 VMEM accumulator.
    # Leading batch dim is squeezed (None block dim) -> same kernel body as 2D.
    tm, tn, tk, Mp, Np, Kp, fp = _plan_tiles(
        M, N, K, in_dtype, out_dtype, budget, prefer_two_m_blocks=(B == 1))

    a_p = _pad_to(a, (B, Mp, Kp))
    b_p = _pad_to(b, (B, Kp, Np))

    out_p = pl.pallas_call(
        functools.partial(_mm_tiled_kernel, k_axis=3),
        out_shape=jax.ShapeDtypeStruct((B, Mp, Np), out_dtype),
        grid_spec=pltpu.PrefetchScalarGridSpec(
            num_scalar_prefetch=0,
            grid=(B, Mp // tm, Np // tn, Kp // tk),
            in_specs=[
                pl.BlockSpec((None, tm, tk), lambda bi, i, j, k: (bi, i, k)),
                pl.BlockSpec((None, tk, tn), lambda bi, i, j, k: (bi, k, j)),
            ],
            out_specs=pl.BlockSpec((None, tm, tn), lambda bi, i, j, k: (bi, i, j)),
            scratch_shapes=[pltpu.VMEM((tm, tn), jnp.float32)],
        ),
        compiler_params=pltpu.CompilerParams(
            dimension_semantics=("parallel", "parallel", "parallel", "arbitrary"),
            vmem_limit_bytes=_vmem_limit(fp, cap),
        ),
        cost_estimate=cost,
    )(a_p, b_p)
    if Mp == M and Np == N:
        return out_p
    return out_p[:, :M, :N]


def bmm_forward(inp: jnp.ndarray, mat2: jnp.ndarray, batch: bool = False) -> jnp.ndarray:
    """JAX/Pallas equivalent of BMM.forward()."""
    out_dtype = jnp.result_type(inp.dtype, mat2.dtype)
    if batch:
        if inp.shape[0] != mat2.shape[0] or inp.shape[2] != mat2.shape[1]:
            raise ValueError('input shape not matching the mat2 shape!!')
        return _matmul_batched(inp, mat2, out_dtype)
    else:
        if inp.shape[1] != mat2.shape[0]:
            raise ValueError('input shape not matching the mat2 shape!!')
        return _matmul_2d(inp, mat2, out_dtype)


if __name__ == "__main__":
    key = jax.random.PRNGKey(0)
    k1, k2, k3, k4, k5, k6, k7, k8 = jax.random.split(key, 8)

    def _check(out, ref):
        assert out.shape == ref.shape, (out.shape, ref.shape)
        err = jnp.max(jnp.abs(out.astype(jnp.float32) - ref.astype(jnp.float32)))
        scale = jnp.maximum(jnp.max(jnp.abs(ref)), 1.0)
        assert float(err / scale) < 1e-2, float(err / scale)

    # --- Non-batched, small (original module-style shapes): (8, 32) @ (32, 16)
    M, K, N = 8, 32, 16
    a = jax.random.normal(k1, (M, K), dtype=jnp.float32)
    b = jax.random.normal(k2, (K, N), dtype=jnp.float32)
    out = jax.block_until_ready(bmm_forward(a, b, batch=False))
    _check(out, a @ b)

    # --- Batched, small: (2, 8, 32) @ (2, 32, 16)
    B = 2
    ab = jax.random.normal(k3, (B, M, K), dtype=jnp.float32)
    bb = jax.random.normal(k4, (B, K, N), dtype=jnp.float32)
    outb = jax.block_until_ready(bmm_forward(ab, bb, batch=True))
    _check(outb, jnp.einsum("bmk,bkn->bmn", ab, bb))

    # --- Non-batched, multi-tile path (exercises tiling + accumulator)
    M2, K2, N2 = 256, 1024, 384
    a2 = jax.random.normal(k5, (M2, K2), dtype=jnp.float32)
    b2 = jax.random.normal(k6, (K2, N2), dtype=jnp.float32)
    out2 = jax.block_until_ready(bmm_forward(a2, b2, batch=False))
    _check(out2, a2 @ b2)

    # --- Batched, packed path with unpadded dims (2, 160, 640) @ (2, 640, 256)
    B3, M3, K3, N3 = 2, 160, 640, 256
    a3 = jax.random.normal(k7, (B3, M3, K3), dtype=jnp.float32)
    b3 = jax.random.normal(k8, (B3, K3, N3), dtype=jnp.float32)
    out3 = jax.block_until_ready(bmm_forward(a3, b3, batch=True))
    _check(out3, jnp.einsum("bmk,bkn->bmn", a3, b3))

    # --- Batched, general tiled path (per-batch tiled grid, K reduction)
    B4, M4, K4, N4 = 2, 384, 1536, 512
    a4 = jax.random.normal(k7, (B4, M4, K4), dtype=jnp.float32)
    b4 = jax.random.normal(k8, (B4, K4, N4), dtype=jnp.float32)
    out4 = jax.block_until_ready(bmm_forward(a4, b4, batch=True))
    _check(out4, jnp.einsum("bmk,bkn->bmn", a4, b4))

    print("KERNEL_OK")
</pallas_src>

<mosaic_0001>
module attributes {stable_mosaic.version = 11 : i64} {
  func.func @_mm_tiled_kernel(%arg0: i32, %arg1: i32, %arg2: i32, %arg3: memref<8x32xf32, #tpu.memory_space<vmem>>, %arg4: memref<32x16xf32, #tpu.memory_space<vmem>>, %arg5: memref<8x16xf32, #tpu.memory_space<vmem>>, %arg6: memref<8x16xf32, #tpu.memory_space<vmem>>) attributes {dimension_semantics = [#tpu.dimension_semantics<parallel>, #tpu.dimension_semantics<parallel>, #tpu.dimension_semantics<arbitrary>], iteration_bounds = array<i64: 1, 1, 1>, scalar_prefetch = 0 : i64, scratch_operands = 1 : i64, tpu.core_type = #tpu.core_type<tc>, window_params = [{transform_indices = @transform_0, window_bounds = array<i64: 8, 32>}, {transform_indices = @transform_1, window_bounds = array<i64: 32, 16>}, {transform_indices = @transform_2, window_bounds = array<i64: 8, 16>}]} {
    %c0_i32 = arith.constant 0 : i32
    %0 = arith.cmpi eq, %arg2, %c0_i32 : i32
    %1 = arith.extui %0 : i1 to i32
    %c0_i32_0 = arith.constant 0 : i32
    %2 = arith.cmpi ne, %1, %c0_i32_0 : i32
    scf.if %2 {
      %cst_10 = arith.constant 0.000000e+00 : f32
      %12 = vector.broadcast %cst_10 : f32 to vector<8x16xf32>
      %c0_11 = arith.constant 0 : index
      %c0_12 = arith.constant 0 : index
      %13 = vector.load %arg6[%c0_11, %c0_12] : memref<8x16xf32, #tpu.memory_space<vmem>>, vector<8x16xf32>
      tpu.vector_store %arg6[%c0_11, %c0_12], %12 {strides = array<i32>} : memref<8x16xf32, #tpu.memory_space<vmem>>, vector<8x16xf32>,
    } else {
    }
    %c0 = arith.constant 0 : index
    %c0_1 = arith.constant 0 : index
    %3 = vector.load %arg6[%c0, %c0_1] : memref<8x16xf32, #tpu.memory_space<vmem>>, vector<8x16xf32>
    %c0_2 = arith.constant 0 : index
    %c0_3 = arith.constant 0 : index
    %4 = vector.load %arg3[%c0_2, %c0_3] : memref<8x32xf32, #tpu.memory_space<vmem>>, vector<8x32xf32>
    %c0_4 = arith.constant 0 : index
    %c0_5 = arith.constant 0 : index
    %5 = vector.load %arg4[%c0_4, %c0_5] : memref<32x16xf32, #tpu.memory_space<vmem>>, vector<32x16xf32>
    %cst = arith.constant dense<0.000000e+00> : vector<8x16xf32>
    %6 = tpu.matmul %4, %5, %cst {dimension_numbers = #tpu.dot_dimension_numbers<[1], [0], [0], [1], [0, 0, 1, 1], [], []>} : vector<8x32xf32>, vector<32x16xf32>, vector<8x16xf32> -> vector<8x16xf32>
    %7 = arith.addf %3, %6 : vector<8x16xf32>
    %c0_6 = arith.constant 0 : index
    %c0_7 = arith.constant 0 : index
    %8 = vector.load %arg6[%c0_6, %c0_7] : memref<8x16xf32, #tpu.memory_space<vmem>>, vector<8x16xf32>
    tpu.vector_store %arg6[%c0_6, %c0_7], %7 {strides = array<i32>} : memref<8x16xf32, #tpu.memory_space<vmem>>, vector<8x16xf32>,
    %c0_i32_8 = arith.constant 0 : i32
    %9 = arith.cmpi eq, %arg2, %c0_i32_8 : i32
    %10 = arith.extui %9 : i1 to i32
    %c0_i32_9 = arith.constant 0 : i32
    %11 = arith.cmpi ne, %10, %c0_i32_9 : i32
    scf.if %11 {
      %c0_10 = arith.constant 0 : index
      %c0_11 = arith.constant 0 : index
      %12 = vector.load %arg6[%c0_10, %c0_11] : memref<8x16xf32, #tpu.memory_space<vmem>>, vector<8x16xf32>
      %c0_12 = arith.constant 0 : index
      %c0_13 = arith.constant 0 : index
      %13 = vector.load %arg5[%c0_12, %c0_13] : memref<8x16xf32, #tpu.memory_space<vmem>>, vector<8x16xf32>
      tpu.vector_store %arg5[%c0_12, %c0_13], %12 {strides = array<i32>} : memref<8x16xf32, #tpu.memory_space<vmem>>, vector<8x16xf32>,
    } else {
    }
    return
  }
  func.func @transform_0(%arg0: i32, %arg1: i32, %arg2: i32) -> (i32, i32) {
    %c0_i32 = arith.constant 0 : i32
    return %arg0, %arg2 : i32, i32
  }
  func.func @transform_1(%arg0: i32, %arg1: i32, %arg2: i32) -> (i32, i32) {
    %c0_i32 = arith.constant 0 : i32
    return %arg2, %arg1 : i32, i32
  }
  func.func @transform_2(%arg0: i32, %arg1: i32, %arg2: i32) -> (i32, i32) {
    %c0_i32 = arith.constant 0 : i32
    return %arg0, %arg1 : i32, i32
  }
}

</mosaic_0001>

<llo_original>
// kernel: tpu_custom_call.1
$region0: #{tpu_custom_call.1}
  #allocation0 [shape = 'u32[]', space=smem, size = 0x4, offset = 0x4, fixed_abs, tag = 'smem constant byte address 0x4 - core index']
  #allocation1 [shape = 'u32[144,128]{1,0:T(1,128)}', space=vmem, size = 0x12000, scoped, tag = 'internal scratch']
  #allocation2 [shape = 'f32[8,16]{1,0:T(8,128)}', space=vmem, size = 0x1000, scoped, tag = 'scratch operand']
  %s0 = inlined_call_operand.vmem [shape: f32[8,32], index: 0, kind: input, shape index: {}]
  %s1 = inlined_call_operand.vmem [shape: f32[32,16], index: 1, kind: input, shape index: {}]
  %s2 = inlined_call_operand.hbm [shape: f32[8,16], index: 2, kind: output, shape index: {}]
  %s3 = sld [smem:[#allocation0]]
  $region26: #{tpu_custom_call.1} parent=0
    _
  %s5 = ssub.s32 1, %s3
  %s6 = scalar_select 0, %s5, %s3
  $region1: #{tpu_custom_call.1} parent=0
    #allocation3 [shape = 'u8[4096]{0}', space=vmem, size = 0x1000, scoped, tag = 'output window, operand 0, single buffered']
    #allocation4 [shape = 's32[1]{0}', space=sflag, size = 0x4, scoped, tag = 'scoped memory for tpu_custom_call.1']
    %7 = vsyncpa [#allocation4], 0
    // Predicated region
    $region2: #{tpu_custom_call.1} parent=1 // pred_check
      _
    $region3: #{tpu_custom_call.1} parent=1 // pred_check_branch
      %9 = sbr.rel (0) target = $region5
    $region4: #{tpu_custom_call.1} parent=1 // pred_region
      _
    $region5: #{tpu_custom_call.1} parent=1 // pred_fallthru
      _
    // Predicated region
    $region6: #{tpu_custom_call.1} parent=1 // pred_check
      _
    $region7: #{tpu_custom_call.1} parent=1 // pred_check_branch
      %11 = sbr.rel (0) target = $region9
    $region8: #{tpu_custom_call.1} parent=1 // pred_region
      _
    $region9: #{tpu_custom_call.1} parent=1 // pred_fallthru
      _
    %p12 = scmp.eq.s32.totalorder 0, 0
    // Predicated region
    $region10: #{tpu_custom_call.1} parent=1 // pred_check
      %p13 = pneg %p12
    $region11: #{tpu_custom_call.1} parent=1 // pred_check_branch
      %15 = sbr.rel (%p13) target = $region13
    $region12: #{tpu_custom_call.1} parent=1 // pred_region
      %vm16 = vcmask 130048
      %17 = vst.msk [vmem:[#allocation2] sm:$0xff] %vm16, 0.0
    $region13: #{tpu_custom_call.1} parent=1 // pred_fallthru
      _
    %v18 = vld [vmem:[#allocation2] sm:$0xff]
    %v19 = vld [vmem:[%s0] sm:$0xff]
    %v20 = vld [vmem:[%s1] sm:$0xff]
    %v21 = vld [vmem:[%s1 + $0x8] sm:$0xff]
    %v22 = vld [vmem:[%s1 + $0x10] sm:$0xff]
    %v23 = vld [vmem:[%s1 + $0x18] sm:$0xff]
    %vm24 = vcmask 261120
    %v26 = vsel %vm24, %v19, 0
    %28 = vmatprep.subr.mxu0 0.0
    %29 = vmatpush1.msra.mxu0 %v20
    %30 = vmatprep.subr.mxu0 0.0
    %31 = vmatpush1.msra.mxu0 %v21
    %32 = vmatprep.subr.mxu0 0.0
    %33 = vmatpush1.msra.mxu0 %v22
    %34 = vmatprep.subr.mxu0 0.0
    %35 = vmatpush1.msra.mxu0 %v23
    %36 = vmatprep.subr.mxu0 0.0
    %37 = vmatpush1.msra.mxu0 0.0
    %38 = vmatprep.subr.mxu0 0.0
    %39 = vmatpush1.msra.mxu0 0.0
    %40 = vmatprep.subr.mxu0 0.0
    %41 = vmatpush1.msra.mxu0 0.0
    %42 = vmatprep.subr.mxu0 0.0
    %43 = vmatpush1.msra.mxu0 0.0
    %44 = vmatprep.subr.mxu0 0.0
    %45 = vmatpush1.msra.mxu0 0.0
    %46 = vmatprep.subr.mxu0 0.0
    %47 = vmatpush1.msra.mxu0 0.0
    %48 = vmatprep.subr.mxu0 0.0
    %49 = vmatpush1.msra.mxu0 0.0
    %50 = vmatprep.subr.mxu0 0.0
    %51 = vmatpush1.msra.mxu0 0.0
    %52 = vmatprep.subr.mxu0 0.0
    %53 = vmatpush1.msra.mxu0 0.0
    %54 = vmatprep.subr.mxu0 0.0
    %55 = vmatpush1.msra.mxu0 0.0
    %56 = vmatprep.subr.mxu0 0.0
    %57 = vmatpush1.msra.mxu0 0.0
    %58 = vmatprep.subr.mxu0 0.0
    %59 = vmatpush1.msra.mxu0 0.0
    %60 = vmatprep.subr.mxu0 0.0
    %61 = vmatpush1.msra.mxu0 0.0
    %62 = vmatprep.subr.mxu0 0.0
    %63 = vmatpush1.msra.mxu0 0.0
    %64 = vmatprep.subr.mxu0 0.0
    %65 = vmatpush1.msra.mxu0 0.0
    %66 = vmatprep.subr.mxu0 0.0
    %67 = vmatpush1.msra.mxu0 0.0
    %68 = vmatprep.subr.mxu0 0.0
    %69 = vmatpush1.msra.mxu0 0.0
    %70 = vmatprep.subr.mxu0 0.0
    %71 = vmatpush1.msra.mxu0 0.0
    %72 = vmatprep.subr.mxu0 0.0
    %73 = vmatpush1.msra.mxu0 0.0
    %74 = vmatprep.subr.mxu0 0.0
    %75 = vmatpush1.msra.mxu0 0.0
    %76 = vmatprep.subr.mxu0 0.0
    %77 = vmatpush1.msra.mxu0 0.0
    %78 = vmatprep.subr.mxu0 0.0
    %79 = vmatpush1.msra.mxu0 0.0
    %80 = vmatprep.subr.mxu0 0.0
    %81 = vmatpush1.msra.mxu0 0.0
    %82 = vmatprep.subr.mxu0 0.0
    %83 = vmatpush1.msra.mxu0 0.0
    %84 = vmatprep.subr.mxu0 0.0
    %85 = vmatpush1.msra.mxu0 0.0
    %86 = vmatprep.subr.mxu0 0.0
    %87 = vmatpush1.msra.mxu0 0.0
    %88 = vmatprep.subr.mxu0 0.0
    %89 = vmatpush1.msra.mxu0 0.0
    %90 = vmatprep.subr.mxu0 0.0
    %91 = vmatpush1.msra.mxu0 0.0
    %92 = vmatprep.mubr.f32.mxu0 0.0
    %93 = vmatmul.mubr.f32.gmra.mrb[0].mxu0 %v26
    %v94 = vpop.f32.mrb[0].mxu0
    %v95 = vadd.f32 0.0, %v94
    %v96 = vpop.f32.mrb[0].mxu0
    %97 = vdwg.mxu0
    %v98 = vadd.f32 %v18, %v95
    %vm99 = vcmask 130048
    %100 = vst.msk [vmem:[#allocation2] sm:$0xff] %vm99, %v98
    // Predicated region
    $region14: #{tpu_custom_call.1} parent=1 // pred_check
      %p101 = pneg %p12
    $region15: #{tpu_custom_call.1} parent=1 // pred_check_branch
      %103 = sbr.rel (%p101) target = $region17
    $region16: #{tpu_custom_call.1} parent=1 // pred_region
      %v104 = vld [vmem:[#allocation2] sm:$0xff]
      %105 = vst.msk [vmem:[#allocation3] sm:$0xff] %vm99, %v104
    $region17: #{tpu_custom_call.1} parent=1 // pred_fallthru
      _
    // Predicated region
    $region18: #{tpu_custom_call.1} parent=1 // pred_check
      _
    $region19: #{tpu_custom_call.1} parent=1 // pred_check_branch
      %107 = sbr.rel (0) target = $region21
    $region20: #{tpu_custom_call.1} parent=1 // pred_region
      %s109 = ssub.s32 128, 128
      %110 = vsyncadd [#allocation4], %s109
      %s112 = sshll.u32 [#allocation3], 4
      %s113 = int_to_ptr.vmem [resolvable:$true] %s112
      %115 = dma.vmem_to_hbm [thread:$0]  %s113, 128, %s2, [#allocation4]
    $region21: #{tpu_custom_call.1} parent=1 // pred_fallthru
      _
    // Predicated region
    $region22: #{tpu_custom_call.1} parent=1 // pred_check
      _
    $region23: #{tpu_custom_call.1} parent=1 // pred_check_branch
      %117 = sbr.rel (0) target = $region25
    $region24: #{tpu_custom_call.1} parent=1 // pred_region
      %118 = dma.done [#allocation4], 128
    $region25: #{tpu_custom_call.1} parent=1 // pred_fallthru
      _
    %119 = vsyncpa [#allocation4], 1

</llo_original>
